<compile_context>
chip_gen: v7x
topology: tpu7x:2x2x1
jax: 0.10.0
libtpu: 0.0.40
codegen_flags: <defaults>
</compile_context>

<pallas_src>
import functools

import jax
import jax.numpy as jnp
from jax.experimental import pallas as pl
from jax.experimental.pallas import tpu as pltpu

EPS = 1e-5


def _cdiv(a, b):
    return -(-a // b)


def _round_up(n, m):
    return ((n + m - 1) // m) * m


def _vmem_budget_bytes():
    """Per-generation VMEM request (~70% of physical, capped at 100 MiB)."""
    try:
        phys = int(pltpu.get_tpu_info().vmem_capacity_bytes)
    except Exception:
        phys = 64 * 1024 * 1024  # conservative: v7x physical VMEM per TensorCore
    return int(min(phys * 0.70, 100 * 1024 * 1024))


def _maskblock_kernel(
    x_ref,      # [tile_b, input_dim]      streamed
    m_ref,      # [tile_b, mask_input_dim] streamed
    w1_ref,     # [mask_input_dim, agg]    mask_generator Linear 1 (matmul dtype)
    w2_ref,     # [agg, input_dim]         mask_generator Linear 2 (matmul dtype)
    w3_ref,     # [input_dim, hidden]      ffn Linear 1            (matmul dtype)
    w4_ref,     # [hidden, input_dim]      ffn Linear 2            (matmul dtype)
    vd_ref,     # [4, input_dim]  rows: ln_gamma, ln_beta, b2, b4  (f32)
    va_ref,     # [1, agg]        row : b1                          (f32)
    vh_ref,     # [3, hidden]     rows: b3, ffn_ln_gamma, ffn_ln_beta (f32)
    out_ref,    # [tile_b, input_dim]
    *,
    mm_dtype,
):
    f32 = jnp.float32

    ln_g = vd_ref[0:1, :].astype(f32)
    ln_b = vd_ref[1:2, :].astype(f32)
    b2 = vd_ref[2:3, :].astype(f32)
    b4 = vd_ref[3:4, :].astype(f32)
    b1 = va_ref[0:1, :].astype(f32)
    b3 = vh_ref[0:1, :].astype(f32)
    fg = vh_ref[1:2, :].astype(f32)
    fb = vh_ref[2:3, :].astype(f32)

    # ---- LayerNorm over the input embedding (two-pass, matches PyTorch) ----
    x = x_ref[...].astype(f32)
    mu = jnp.mean(x, axis=-1, keepdims=True)
    xc = x - mu
    var = jnp.mean(xc * xc, axis=-1, keepdims=True)
    ln_emb = xc * jax.lax.rsqrt(var + EPS) * ln_g + ln_b

    # ---- mask generator: Linear -> ReLU -> Linear ---------------------------
    m = m_ref[...].astype(mm_dtype)
    h = jnp.dot(m, w1_ref[...], preferred_element_type=f32) + b1
    h = jnp.maximum(h, 0.0)
    wts = jnp.dot(h.astype(mm_dtype), w2_ref[...], preferred_element_type=f32) + b2

    weighted = ln_emb * wts

    # ---- ffn: Linear -> LayerNorm -> ReLU -> Linear --------------------------
    z = jnp.dot(weighted.astype(mm_dtype), w3_ref[...], preferred_element_type=f32) + b3
    mu2 = jnp.mean(z, axis=-1, keepdims=True)
    zc = z - mu2
    var2 = jnp.mean(zc * zc, axis=-1, keepdims=True)
    zn = zc * jax.lax.rsqrt(var2 + EPS) * fg + fb
    zn = jnp.maximum(zn, 0.0)
    out = jnp.dot(zn.astype(mm_dtype), w4_ref[...], preferred_element_type=f32) + b4

    out_ref[...] = out.astype(out_ref.dtype)


def maskblock_forward(x, mask_input, params, *, tile_b=None, matmul_dtype=jnp.bfloat16):
    """x: [B, input_dim], mask_input: [B, mask_input_dim] -> [B, input_dim]."""
    B, input_dim = x.shape
    Bm, mask_dim = mask_input.shape
    assert Bm == B, "input and mask_input must share the batch dim"
    (ln_g, ln_b, w1, b1, w2, b2, w3, b3, fg, fb, w4, b4) = params
    agg_dim = w1.shape[-1]
    hidden_dim = w3.shape[-1]

    mm = jnp.dtype(matmul_dtype)
    f32 = jnp.float32

    # Parameter-sized (not batch-sized) one-time prep: cast matmul weights and
    # pack the 8 small vectors into 3 arrays (fewer constant DMA streams).
    w1c = w1.astype(mm)
    w2c = w2.astype(mm)
    w3c = w3.astype(mm)
    w4c = w4.astype(mm)

    def row(a, d):
        return jnp.reshape(a, (1, d)).astype(f32)

    vecD = jnp.concatenate(
        [row(ln_g, input_dim), row(ln_b, input_dim), row(b2, input_dim), row(b4, input_dim)],
        axis=0)
    vecA = row(b1, agg_dim)
    vecH = jnp.concatenate([row(b3, hidden_dim), row(fg, hidden_dim), row(fb, hidden_dim)], axis=0)

    # ---- generation-aware batch tiling --------------------------------------
    x_isz = jnp.dtype(x.dtype).itemsize
    m_isz = jnp.dtype(mask_input.dtype).itemsize
    sublane = {4: 8, 2: 16, 1: 32}.get(x_isz, 8)

    budget = _vmem_budget_bytes()
    weight_bytes = (mask_dim * agg_dim + agg_dim * input_dim
                    + input_dim * hidden_dim + hidden_dim * input_dim) * mm.itemsize
    weight_bytes += (4 * input_dim + agg_dim + 3 * hidden_dim) * 4
    row_bytes = input_dim * x_isz + mask_dim * m_isz + input_dim * x_isz  # x in, m in, out
    avail = budget - weight_bytes
    cap_rows = avail // (2 * row_bytes) if avail > 0 else sublane  # streams are double-buffered
    cap_rows = max(sublane, (cap_rows // sublane) * sublane)
    cap_rows = min(cap_rows, 2048)

    if tile_b is None:
        if B <= sublane:
            tile_b = B  # single step; block dim == full batch dim is always legal
        else:
            # keep the grid >= 2 steps (pipelining + v7x megacore) within the VMEM cap
            tile_b = max(sublane, min(cap_rows, _round_up(_cdiv(B, 2), sublane)))
    grid = _cdiv(B, tile_b)

    def _const_spec(shape):
        nd = len(shape)
        # Grid-invariant operand: fetched once, single-buffered.
        return pl.BlockSpec(shape, lambda i, _n=nd: (0,) * _n, pipeline_mode=pl.Buffered(1))

    in_specs = [
        pl.BlockSpec((tile_b, input_dim), lambda i: (i, 0)),
        pl.BlockSpec((tile_b, mask_dim), lambda i: (i, 0)),
        _const_spec((mask_dim, agg_dim)),
        _const_spec((agg_dim, input_dim)),
        _const_spec((input_dim, hidden_dim)),
        _const_spec((hidden_dim, input_dim)),
        _const_spec((4, input_dim)),
        _const_spec((1, agg_dim)),
        _const_spec((3, hidden_dim)),
    ]
    out_spec = pl.BlockSpec((tile_b, input_dim), lambda i: (i, 0))

    kernel = functools.partial(_maskblock_kernel, mm_dtype=mm)

    out = pl.pallas_call(
        kernel,
        out_shape=jax.ShapeDtypeStruct((B, input_dim), x.dtype),
        grid_spec=pltpu.PrefetchScalarGridSpec(
            num_scalar_prefetch=0,
            grid=(grid,),
            in_specs=in_specs,
            out_specs=out_spec,
        ),
        compiler_params=pltpu.CompilerParams(
            dimension_semantics=("parallel",),
            vmem_limit_bytes=int(budget),
        ),
    )(x, mask_input, w1c, w2c, w3c, w4c, vecD, vecA, vecH)

    return out


def init_params(key, input_dim, mask_input_dim, aggregation_dim, hidden_dim, dtype=jnp.float32):
    ks = jax.random.split(key, 8)
    s = 0.05
    ln_g = jnp.ones((1, input_dim), dtype)
    ln_b = jnp.zeros((1, input_dim), dtype)
    w1 = (jax.random.normal(ks[0], (mask_input_dim, aggregation_dim)) * s).astype(dtype)
    b1 = (jax.random.normal(ks[1], (1, aggregation_dim)) * s).astype(dtype)
    w2 = (jax.random.normal(ks[2], (aggregation_dim, input_dim)) * s).astype(dtype)
    b2 = (jax.random.normal(ks[3], (1, input_dim)) * s).astype(dtype)
    w3 = (jax.random.normal(ks[4], (input_dim, hidden_dim)) * s).astype(dtype)
    b3 = (jax.random.normal(ks[5], (1, hidden_dim)) * s).astype(dtype)
    fg = jnp.ones((1, hidden_dim), dtype)
    fb = jnp.zeros((1, hidden_dim), dtype)
    w4 = (jax.random.normal(ks[6], (hidden_dim, input_dim)) * s).astype(dtype)
    b4 = (jax.random.normal(ks[7], (1, input_dim)) * s).astype(dtype)
    return (ln_g, ln_b, w1, b1, w2, b2, w3, b3, fg, fb, w4, b4)


def reference_forward(x, m, params):
    (ln_g, ln_b, w1, b1, w2, b2, w3, b3, fg, fb, w4, b4) = params

    def ln(v, g, b):
        mu = jnp.mean(v, -1, keepdims=True)
        var = jnp.mean((v - mu) ** 2, -1, keepdims=True)
        return (v - mu) * jax.lax.rsqrt(var + EPS) * g + b

    ln_emb = ln(x, ln_g, ln_b)
    w = jnp.maximum(m @ w1 + b1, 0.0) @ w2 + b2
    we = ln_emb * w
    z = jnp.maximum(ln(we @ w3 + b3, fg, fb), 0.0)
    return z @ w4 + b4


if __name__ == "__main__":
    # Module config (mirrors MaskBlock __init__): reduction_ratio takes precedence.
    input_dim = 32
    mask_input_dim = 16
    reduction_ratio = 2.0
    aggregation_dim = int(mask_input_dim * reduction_ratio)   # 32
    hidden_dim = 64
    B = 8

    key = jax.random.PRNGKey(0)
    kx, km, kp = jax.random.split(key, 3)
    x = jax.random.normal(kx, (B, input_dim), jnp.float32)
    mask_input = jax.random.normal(km, (B, mask_input_dim), jnp.float32)
    params = init_params(kp, input_dim, mask_input_dim, aggregation_dim, hidden_dim)

    ref = reference_forward(x, mask_input, params)

    # Default path: bf16 matmul operands, f32 accumulation + f32 LayerNorm.
    out = jax.block_until_ready(maskblock_forward(x, mask_input, params))
    assert out.shape == (B, input_dim)
    assert jnp.allclose(out, ref, atol=5e-2, rtol=5e-2), "bf16-matmul path mismatch vs reference"

    # Exact-f32 path must match the reference tightly.
    out_f32 = jax.block_until_ready(
        maskblock_forward(x, mask_input, params, matmul_dtype=jnp.float32))
    assert jnp.allclose(out_f32, ref, atol=1e-4, rtol=1e-4), "f32 path mismatch vs reference"

    # Multi-step grid with a partial last block (B=20 -> tile_b=16, grid=2).
    B2 = 20
    x2 = jax.random.normal(kx, (B2, input_dim), jnp.float32)
    m2 = jax.random.normal(km, (B2, mask_input_dim), jnp.float32)
    out2 = jax.block_until_ready(
        maskblock_forward(x2, m2, params, matmul_dtype=jnp.float32))
    ref2 = reference_forward(x2, m2, params)
    assert out2.shape == (B2, input_dim)
    assert jnp.allclose(out2, ref2, atol=1e-4, rtol=1e-4), "tiled / partial-block mismatch"

    print("KERNEL_OK")
</pallas_src>

<mosaic_0001>
module attributes {stable_mosaic.version = 11 : i64} {
  func.func @_maskblock_kernel(%arg0: i32, %arg1: memref<8x32xf32, #tpu.memory_space<vmem>>, %arg2: memref<8x16xf32, #tpu.memory_space<vmem>>, %arg3: memref<16x32xbf16, #tpu.memory_space<vmem>>, %arg4: memref<32x32xbf16, #tpu.memory_space<vmem>>, %arg5: memref<32x64xbf16, #tpu.memory_space<vmem>>, %arg6: memref<64x32xbf16, #tpu.memory_space<vmem>>, %arg7: memref<4x32xf32, #tpu.memory_space<vmem>>, %arg8: memref<1x32xf32, #tpu.memory_space<vmem>>, %arg9: memref<3x64xf32, #tpu.memory_space<vmem>>, %arg10: memref<8x32xf32, #tpu.memory_space<vmem>>) attributes {dimension_semantics = [#tpu.dimension_semantics<parallel>], iteration_bounds = array<i64: 1>, scalar_prefetch = 0 : i64, scratch_operands = 0 : i64, tpu.core_type = #tpu.core_type<tc>, window_params = [{transform_indices = @transform_0, window_bounds = array<i64: 8, 32>}, {transform_indices = @transform_1, window_bounds = array<i64: 8, 16>}, {pipeline_mode = #tpu.pipeline_mode<synchronous>, transform_indices = @transform_2, window_bounds = array<i64: 16, 32>}, {pipeline_mode = #tpu.pipeline_mode<synchronous>, transform_indices = @transform_3, window_bounds = array<i64: 32, 32>}, {pipeline_mode = #tpu.pipeline_mode<synchronous>, transform_indices = @transform_4, window_bounds = array<i64: 32, 64>}, {pipeline_mode = #tpu.pipeline_mode<synchronous>, transform_indices = @transform_5, window_bounds = array<i64: 64, 32>}, {pipeline_mode = #tpu.pipeline_mode<synchronous>, transform_indices = @transform_6, window_bounds = array<i64: 4, 32>}, {pipeline_mode = #tpu.pipeline_mode<synchronous>, transform_indices = @transform_7, window_bounds = array<i64: 1, 32>}, {pipeline_mode = #tpu.pipeline_mode<synchronous>, transform_indices = @transform_8, window_bounds = array<i64: 3, 64>}, {transform_indices = @transform_9, window_bounds = array<i64: 8, 32>}]} {
    %c0 = arith.constant 0 : index
    %c0_0 = arith.constant 0 : index
    %0 = vector.load %arg7[%c0, %c0_0] : memref<4x32xf32, #tpu.memory_space<vmem>>, vector<1x32xf32>
    %c1 = arith.constant 1 : index
    %c0_1 = arith.constant 0 : index
    %1 = vector.load %arg7[%c1, %c0_1] : memref<4x32xf32, #tpu.memory_space<vmem>>, vector<1x32xf32>
    %c2 = arith.constant 2 : index
    %c0_2 = arith.constant 0 : index
    %2 = vector.load %arg7[%c2, %c0_2] : memref<4x32xf32, #tpu.memory_space<vmem>>, vector<1x32xf32>
    %c3 = arith.constant 3 : index
    %c0_3 = arith.constant 0 : index
    %3 = vector.load %arg7[%c3, %c0_3] : memref<4x32xf32, #tpu.memory_space<vmem>>, vector<1x32xf32>
    %c0_4 = arith.constant 0 : index
    %c0_5 = arith.constant 0 : index
    %4 = vector.load %arg8[%c0_4, %c0_5] : memref<1x32xf32, #tpu.memory_space<vmem>>, vector<1x32xf32>
    %c0_6 = arith.constant 0 : index
    %c0_7 = arith.constant 0 : index
    %5 = vector.load %arg9[%c0_6, %c0_7] : memref<3x64xf32, #tpu.memory_space<vmem>>, vector<1x64xf32>
    %c1_8 = arith.constant 1 : index
    %c0_9 = arith.constant 0 : index
    %6 = vector.load %arg9[%c1_8, %c0_9] : memref<3x64xf32, #tpu.memory_space<vmem>>, vector<1x64xf32>
    %c2_10 = arith.constant 2 : index
    %c0_11 = arith.constant 0 : index
    %7 = vector.load %arg9[%c2_10, %c0_11] : memref<3x64xf32, #tpu.memory_space<vmem>>, vector<1x64xf32>
    %c0_12 = arith.constant 0 : index
    %c0_13 = arith.constant 0 : index
    %8 = vector.load %arg1[%c0_12, %c0_13] : memref<8x32xf32, #tpu.memory_space<vmem>>, vector<8x32xf32>
    %cst = arith.constant dense<0.000000e+00> : vector<8xf32>
    %9 = vector.multi_reduction <add>, %8, %cst [1] : vector<8x32xf32> to vector<8xf32>
    %10 = vector.shape_cast %9 : vector<8xf32> to vector<8x1xf32>
    %cst_14 = arith.constant 3.200000e+01 : f32
    %11 = vector.broadcast %cst_14 : f32 to vector<8x1xf32>
    %12 = arith.divf %10, %11 : vector<8x1xf32>
    %13 = vector.broadcast %12 : vector<8x1xf32> to vector<8x32xf32>
    %14 = arith.subf %8, %13 : vector<8x32xf32>
    %15 = arith.mulf %14, %14 : vector<8x32xf32>
    %cst_15 = arith.constant dense<0.000000e+00> : vector<8xf32>
    %16 = vector.multi_reduction <add>, %15, %cst_15 [1] : vector<8x32xf32> to vector<8xf32>
    %17 = vector.shape_cast %16 : vector<8xf32> to vector<8x1xf32>
    %cst_16 = arith.constant 3.200000e+01 : f32
    %18 = vector.broadcast %cst_16 : f32 to vector<8x1xf32>
    %19 = arith.divf %17, %18 : vector<8x1xf32>
    %cst_17 = arith.constant 9.99999974E-6 : f32
    %20 = vector.broadcast %cst_17 : f32 to vector<8x1xf32>
    %21 = arith.addf %19, %20 : vector<8x1xf32>
    %22 = math.rsqrt %21 : vector<8x1xf32>
    %23 = vector.broadcast %22 : vector<8x1xf32> to vector<8x32xf32>
    %24 = arith.mulf %14, %23 : vector<8x32xf32>
    %25 = vector.broadcast %0 : vector<1x32xf32> to vector<8x32xf32>
    %26 = arith.mulf %24, %25 : vector<8x32xf32>
    %27 = vector.broadcast %1 : vector<1x32xf32> to vector<8x32xf32>
    %28 = arith.addf %26, %27 : vector<8x32xf32>
    %c0_18 = arith.constant 0 : index
    %c0_19 = arith.constant 0 : index
    %29 = vector.load %arg2[%c0_18, %c0_19] : memref<8x16xf32, #tpu.memory_space<vmem>>, vector<8x16xf32>
    %30 = arith.truncf %29 : vector<8x16xf32> to vector<8x16xbf16>
    %c0_20 = arith.constant 0 : index
    %c0_21 = arith.constant 0 : index
    %31 = vector.load %arg3[%c0_20, %c0_21] : memref<16x32xbf16, #tpu.memory_space<vmem>>, vector<16x32xbf16>
    %cst_22 = arith.constant dense<0.000000e+00> : vector<8x32xf32>
    %32 = tpu.matmul %30, %31, %cst_22 {dimension_numbers = #tpu.dot_dimension_numbers<[1], [0], [0], [1], [0, 0, 1, 1], [], []>} : vector<8x16xbf16>, vector<16x32xbf16>, vector<8x32xf32> -> vector<8x32xf32>
    %33 = vector.broadcast %4 : vector<1x32xf32> to vector<8x32xf32>
    %34 = arith.addf %32, %33 : vector<8x32xf32>
    %cst_23 = arith.constant 0.000000e+00 : f32
    %35 = vector.broadcast %cst_23 : f32 to vector<8x32xf32>
    %36 = arith.maximumf %34, %35 : vector<8x32xf32>
    %37 = arith.truncf %36 : vector<8x32xf32> to vector<8x32xbf16>
    %c0_24 = arith.constant 0 : index
    %c0_25 = arith.constant 0 : index
    %38 = vector.load %arg4[%c0_24, %c0_25] : memref<32x32xbf16, #tpu.memory_space<vmem>>, vector<32x32xbf16>
    %cst_26 = arith.constant dense<0.000000e+00> : vector<8x32xf32>
    %39 = tpu.matmul %37, %38, %cst_26 {dimension_numbers = #tpu.dot_dimension_numbers<[1], [0], [0], [1], [0, 0, 1, 1], [], []>} : vector<8x32xbf16>, vector<32x32xbf16>, vector<8x32xf32> -> vector<8x32xf32>
    %40 = vector.broadcast %2 : vector<1x32xf32> to vector<8x32xf32>
    %41 = arith.addf %39, %40 : vector<8x32xf32>
    %42 = arith.mulf %28, %41 : vector<8x32xf32>
    %43 = arith.truncf %42 : vector<8x32xf32> to vector<8x32xbf16>
    %c0_27 = arith.constant 0 : index
    %c0_28 = arith.constant 0 : index
    %44 = vector.load %arg5[%c0_27, %c0_28] : memref<32x64xbf16, #tpu.memory_space<vmem>>, vector<32x64xbf16>
    %cst_29 = arith.constant dense<0.000000e+00> : vector<8x64xf32>
    %45 = tpu.matmul %43, %44, %cst_29 {dimension_numbers = #tpu.dot_dimension_numbers<[1], [0], [0], [1], [0, 0, 1, 1], [], []>} : vector<8x32xbf16>, vector<32x64xbf16>, vector<8x64xf32> -> vector<8x64xf32>
    %46 = vector.broadcast %5 : vector<1x64xf32> to vector<8x64xf32>
    %47 = arith.addf %45, %46 : vector<8x64xf32>
    %cst_30 = arith.constant dense<0.000000e+00> : vector<8xf32>
    %48 = vector.multi_reduction <add>, %47, %cst_30 [1] : vector<8x64xf32> to vector<8xf32>
    %49 = vector.shape_cast %48 : vector<8xf32> to vector<8x1xf32>
    %cst_31 = arith.constant 6.400000e+01 : f32
    %50 = vector.broadcast %cst_31 : f32 to vector<8x1xf32>
    %51 = arith.divf %49, %50 : vector<8x1xf32>
    %52 = vector.broadcast %51 : vector<8x1xf32> to vector<8x64xf32>
    %53 = arith.subf %47, %52 : vector<8x64xf32>
    %54 = arith.mulf %53, %53 : vector<8x64xf32>
    %cst_32 = arith.constant dense<0.000000e+00> : vector<8xf32>
    %55 = vector.multi_reduction <add>, %54, %cst_32 [1] : vector<8x64xf32> to vector<8xf32>
    %56 = vector.shape_cast %55 : vector<8xf32> to vector<8x1xf32>
    %cst_33 = arith.constant 6.400000e+01 : f32
    %57 = vector.broadcast %cst_33 : f32 to vector<8x1xf32>
    %58 = arith.divf %56, %57 : vector<8x1xf32>
    %cst_34 = arith.constant 9.99999974E-6 : f32
    %59 = vector.broadcast %cst_34 : f32 to vector<8x1xf32>
    %60 = arith.addf %58, %59 : vector<8x1xf32>
    %61 = math.rsqrt %60 : vector<8x1xf32>
    %62 = vector.broadcast %61 : vector<8x1xf32> to vector<8x64xf32>
    %63 = arith.mulf %53, %62 : vector<8x64xf32>
    %64 = vector.broadcast %6 : vector<1x64xf32> to vector<8x64xf32>
    %65 = arith.mulf %63, %64 : vector<8x64xf32>
    %66 = vector.broadcast %7 : vector<1x64xf32> to vector<8x64xf32>
    %67 = arith.addf %65, %66 : vector<8x64xf32>
    %cst_35 = arith.constant 0.000000e+00 : f32
    %68 = vector.broadcast %cst_35 : f32 to vector<8x64xf32>
    %69 = arith.maximumf %67, %68 : vector<8x64xf32>
    %70 = arith.truncf %69 : vector<8x64xf32> to vector<8x64xbf16>
    %c0_36 = arith.constant 0 : index
    %c0_37 = arith.constant 0 : index
    %71 = vector.load %arg6[%c0_36, %c0_37] : memref<64x32xbf16, #tpu.memory_space<vmem>>, vector<64x32xbf16>
    %cst_38 = arith.constant dense<0.000000e+00> : vector<8x32xf32>
    %72 = tpu.matmul %70, %71, %cst_38 {dimension_numbers = #tpu.dot_dimension_numbers<[1], [0], [0], [1], [0, 0, 1, 1], [], []>} : vector<8x64xbf16>, vector<64x32xbf16>, vector<8x32xf32> -> vector<8x32xf32>
    %73 = vector.broadcast %3 : vector<1x32xf32> to vector<8x32xf32>
    %74 = arith.addf %72, %73 : vector<8x32xf32>
    %c0_39 = arith.constant 0 : index
    %c0_40 = arith.constant 0 : index
    %75 = vector.load %arg10[%c0_39, %c0_40] : memref<8x32xf32, #tpu.memory_space<vmem>>, vector<8x32xf32>
    tpu.vector_store %arg10[%c0_39, %c0_40], %74 {strides = array<i32>} : memref<8x32xf32, #tpu.memory_space<vmem>>, vector<8x32xf32>,
    return
  }
  func.func @transform_0(%arg0: i32) -> (i32, i32) {
    %c0_i32 = arith.constant 0 : i32
    %c0_i32_0 = arith.constant 0 : i32
    return %arg0, %c0_i32 : i32, i32
  }
  func.func @transform_1(%arg0: i32) -> (i32, i32) {
    %c0_i32 = arith.constant 0 : i32
    %c0_i32_0 = arith.constant 0 : i32
    return %arg0, %c0_i32 : i32, i32
  }
  func.func @transform_2(%arg0: i32) -> (i32, i32) {
    %c0_i32 = arith.constant 0 : i32
    %c0_i32_0 = arith.constant 0 : i32
    %c0_i32_1 = arith.constant 0 : i32
    return %c0_i32, %c0_i32_0 : i32, i32
  }
  func.func @transform_3(%arg0: i32) -> (i32, i32) {
    %c0_i32 = arith.constant 0 : i32
    %c0_i32_0 = arith.constant 0 : i32
    %c0_i32_1 = arith.constant 0 : i32
    return %c0_i32, %c0_i32_0 : i32, i32
  }
  func.func @transform_4(%arg0: i32) -> (i32, i32) {
    %c0_i32 = arith.constant 0 : i32
    %c0_i32_0 = arith.constant 0 : i32
    %c0_i32_1 = arith.constant 0 : i32
    return %c0_i32, %c0_i32_0 : i32, i32
  }
  func.func @transform_5(%arg0: i32) -> (i32, i32) {
    %c0_i32 = arith.constant 0 : i32
    %c0_i32_0 = arith.constant 0 : i32
    %c0_i32_1 = arith.constant 0 : i32
    return %c0_i32, %c0_i32_0 : i32, i32
  }
  func.func @transform_6(%arg0: i32) -> (i32, i32) {
    %c0_i32 = arith.constant 0 : i32
    %c0_i32_0 = arith.constant 0 : i32
    %c0_i32_1 = arith.constant 0 : i32
    return %c0_i32, %c0_i32_0 : i32, i32
  }
  func.func @transform_7(%arg0: i32) -> (i32, i32) {
    %c0_i32 = arith.constant 0 : i32
    %c0_i32_0 = arith.constant 0 : i32
    %c0_i32_1 = arith.constant 0 : i32
    return %c0_i32, %c0_i32_0 : i32, i32
  }
  func.func @transform_8(%arg0: i32) -> (i32, i32) {
    %c0_i32 = arith.constant 0 : i32
    %c0_i32_0 = arith.constant 0 : i32
    %c0_i32_1 = arith.constant 0 : i32
    return %c0_i32, %c0_i32_0 : i32, i32
  }
  func.func @transform_9(%arg0: i32) -> (i32, i32) {
    %c0_i32 = arith.constant 0 : i32
    %c0_i32_0 = arith.constant 0 : i32
    return %arg0, %c0_i32 : i32, i32
  }
}

</mosaic_0001>

<llo_original>
// kernel: tpu_custom_call.1
$region0: #{tpu_custom_call.1}
  #allocation0 [shape = 'u32[]', space=smem, size = 0x4, offset = 0x4, fixed_abs, tag = 'smem constant byte address 0x4 - core index']
  #allocation1 [shape = 'u32[144,128]{1,0:T(1,128)}', space=vmem, size = 0x12000, scoped, tag = 'internal scratch']
  %s0 = inlined_call_operand.vmem [shape: f32[8,32], index: 0, kind: input, shape index: {}]
  %s1 = inlined_call_operand.vmem [shape: f32[8,16], index: 1, kind: input, shape index: {}]
  %s2 = inlined_call_operand.hbm [shape: bf16[16,32], index: 2, kind: input, shape index: {}]
  %s3 = inlined_call_operand.vmem [shape: bf16[32,32], index: 3, kind: input, shape index: {}]
  %s4 = inlined_call_operand.vmem [shape: bf16[32,64], index: 4, kind: input, shape index: {}]
  %s5 = inlined_call_operand.vmem [shape: bf16[64,32], index: 5, kind: input, shape index: {}]
  %s6 = inlined_call_operand.vmem [shape: f32[4,32], index: 6, kind: input, shape index: {}]
  %s7 = inlined_call_operand.vmem [shape: f32[1,32], index: 7, kind: input, shape index: {}]
  %s8 = inlined_call_operand.vmem [shape: f32[3,64], index: 8, kind: input, shape index: {}]
  %s9 = inlined_call_operand.hbm [shape: f32[8,32], index: 9, kind: output, shape index: {}]
  %s10 = sld [smem:[#allocation0]]
  $region50: #{tpu_custom_call.1} parent=0
    _
  %s12 = ssub.s32 1, %s10
  %s13 = scalar_select 0, %s12, %s10
  $region1: #{tpu_custom_call.1} parent=0
    #allocation2 [shape = 'u8[4096]{0}', space=vmem, size = 0x1000, scoped, tag = 'input window, operand 2, single buffered']
    #allocation3 [shape = 's32[1]{0}', space=sflag, size = 0x4, scoped, tag = 'scoped memory for tpu_custom_call.1']
    #allocation4 [shape = 's32[1]{0}', space=sflag, size = 0x4, scoped, tag = 'scoped memory for tpu_custom_call.1']
    #allocation5 [shape = 'u8[4096]{0}', space=vmem, size = 0x1000, scoped, tag = 'output window, operand 0, single buffered']
    %14 = vsyncpa [#allocation3], 0
    %15 = vsyncpa [#allocation4], 0
    // Predicated region
    $region2: #{tpu_custom_call.1} parent=1 // pred_check
      _
    $region3: #{tpu_custom_call.1} parent=1 // pred_check_branch
      %17 = sbr.rel (0) target = $region5
    $region4: #{tpu_custom_call.1} parent=1 // pred_region
      _
    $region5: #{tpu_custom_call.1} parent=1 // pred_fallthru
      _
    // Predicated region
    $region6: #{tpu_custom_call.1} parent=1 // pred_check
      _
    $region7: #{tpu_custom_call.1} parent=1 // pred_check_branch
      %19 = sbr.rel (0) target = $region9
    $region8: #{tpu_custom_call.1} parent=1 // pred_region
      _
    $region9: #{tpu_custom_call.1} parent=1 // pred_fallthru
      _
    // Predicated region
    $region10: #{tpu_custom_call.1} parent=1 // pred_check
      _
    $region11: #{tpu_custom_call.1} parent=1 // pred_check_branch
      %21 = sbr.rel (0) target = $region13
    $region12: #{tpu_custom_call.1} parent=1 // pred_region
      %s23 = ssub.s32 128, 128
      %24 = vsyncadd [#allocation3], %s23
      %s25 = sshll.u32 [#allocation2], 4
      %s26 = int_to_ptr.vmem [resolvable:$true] %s25
      %31 = dma.hbm_to_vmem [thread:$0]  %s2, 128, %s26, [#allocation3], 64, 64, 4
    $region13: #{tpu_custom_call.1} parent=1 // pred_fallthru
      _
    // Predicated region
    $region14: #{tpu_custom_call.1} parent=1 // pred_check
      _
    $region15: #{tpu_custom_call.1} parent=1 // pred_check_branch
      %33 = sbr.rel (0) target = $region17
    $region16: #{tpu_custom_call.1} parent=1 // pred_region
      _
    $region17: #{tpu_custom_call.1} parent=1 // pred_fallthru
      _
    // Predicated region
    $region18: #{tpu_custom_call.1} parent=1 // pred_check
      _
    $region19: #{tpu_custom_call.1} parent=1 // pred_check_branch
      %35 = sbr.rel (0) target = $region21
    $region20: #{tpu_custom_call.1} parent=1 // pred_region
      _
    $region21: #{tpu_custom_call.1} parent=1 // pred_fallthru
      _
    // Predicated region
    $region22: #{tpu_custom_call.1} parent=1 // pred_check
      _
    $region23: #{tpu_custom_call.1} parent=1 // pred_check_branch
      %37 = sbr.rel (0) target = $region25
    $region24: #{tpu_custom_call.1} parent=1 // pred_region
      _
    $region25: #{tpu_custom_call.1} parent=1 // pred_fallthru
      _
    // Predicated region
    $region26: #{tpu_custom_call.1} parent=1 // pred_check
      _
    $region27: #{tpu_custom_call.1} parent=1 // pred_check_branch
      %39 = sbr.rel (0) target = $region29
    $region28: #{tpu_custom_call.1} parent=1 // pred_region
      _
    $region29: #{tpu_custom_call.1} parent=1 // pred_fallthru
      _
    // Predicated region
    $region30: #{tpu_custom_call.1} parent=1 // pred_check
      _
    $region31: #{tpu_custom_call.1} parent=1 // pred_check_branch
      %41 = sbr.rel (0) target = $region33
    $region32: #{tpu_custom_call.1} parent=1 // pred_region
      _
    $region33: #{tpu_custom_call.1} parent=1 // pred_fallthru
      _
    // Predicated region
    $region34: #{tpu_custom_call.1} parent=1 // pred_check
      _
    $region35: #{tpu_custom_call.1} parent=1 // pred_check_branch
      %43 = sbr.rel (0) target = $region37
    $region36: #{tpu_custom_call.1} parent=1 // pred_region
      _
    $region37: #{tpu_custom_call.1} parent=1 // pred_fallthru
      _
    // Predicated region
    $region38: #{tpu_custom_call.1} parent=1 // pred_check
      _
    $region39: #{tpu_custom_call.1} parent=1 // pred_check_branch
      %45 = sbr.rel (0) target = $region41
    $region40: #{tpu_custom_call.1} parent=1 // pred_region
      %46 = dma.done [#allocation3], 128
    $region41: #{tpu_custom_call.1} parent=1 // pred_fallthru
      _
    %v48 = vld [vmem:[%s6] sm:$0x1]
    %v49 = vld [vmem:[%s6 + $0x1] sm:$0x1]
    %v50 = vld [vmem:[%s6 + $0x2] sm:$0x1]
    %v51 = vld [vmem:[%s6 + $0x3] sm:$0x1]
    %v52 = vld [vmem:[%s7] sm:$0x1]
    %v53 = vld [vmem:[%s8] sm:$0x1]
    %v54 = vld [vmem:[%s8 + $0x1] sm:$0x1]
    %v55 = vld [vmem:[%s8 + $0x2] sm:$0x1]
    %v56 = vld [vmem:[%s0] sm:$0xff]
    %vm57 = vcmask 261120
    %v58 = vsel %vm57, %v56, 0.0
    %59 = vadd.xlane.f32.xlu0 %v58
    %v60 = vpop.xlane.xlu0 %59
    %v61 = vrcp.pop 32.0
    %v62 = vmul.f32 %v60, %v61
    %v63 = vsub.f32 %v56, %v62
    %v64 = vmul.f32 %v63, %v63
    %v65 = vsel %vm57, %v64, 0.0
    %66 = vadd.xlane.f32.xlu0 %v65
    %v67 = vpop.xlane.xlu0 %66
    %v68 = vmul.f32 %v67, %v61
    %v69 = vadd.f32 %v68, 1e-05
    %v70 = vrsqrt.pop %v69
    %v71 = vmul.f32 %v63, %v70
    %v72 = vlaneseq
    %v73 = vshrl.u32 %v72, 7
    %v74 = vsub.s32 0, %v73
    %v75 = vrot.slane %v48, %v74
    %v76 = vmul.f32 %v71, %v75
    %v77 = vlaneseq
    %v78 = vshrl.u32 %v77, 7
    %v79 = vsub.s32 0, %v78
    %v80 = vrot.slane %v49, %v79
    %v81 = vadd.f32 %v76, %v80
    %v82 = vld [vmem:[%s1] sm:$0xff]
    %v83 = vpack.c.bf16 %v82, %v82
    %v84 = vld [vmem:[#allocation2] sm:$0xf]
    %v85 = vld [vmem:[#allocation2 + $0x4] sm:$0xf]
    %v87 = vlaneseq
    %v88 = vshrl.u32 %v87, 7
    %v89 = vsub.s32 0, %v88
    %v90 = vrot.slane %v52, %v89
    %v94 = vunpack.c.l.b16 %v84
    %v95 = vunpack.c.l.b16 %v85
    %v96 = vpack.c.b16 %v95, %v94
    %vm98 = vcmask 130048
    %v100 = vsel %vm98, %v83, 0
    %102 = vmatprep.subr.bf16.mxu0 0
    %103 = vmatpush1.bf16.msra.mxu0 %v96
    %104 = vmatprep.subr.bf16.mxu0 0
    %105 = vmatpush1.bf16.msra.mxu0 0
    %106 = vmatprep.subr.bf16.mxu0 0
    %107 = vmatpush1.bf16.msra.mxu0 0
    %108 = vmatprep.subr.bf16.mxu0 0
    %109 = vmatpush1.bf16.msra.mxu0 0
    %110 = vmatprep.subr.bf16.mxu0 0
    %111 = vmatpush1.bf16.msra.mxu0 0
    %112 = vmatprep.subr.bf16.mxu0 0
    %113 = vmatpush1.bf16.msra.mxu0 0
    %114 = vmatprep.subr.bf16.mxu0 0
    %115 = vmatpush1.bf16.msra.mxu0 0
    %116 = vmatprep.subr.bf16.mxu0 0
    %117 = vmatpush1.bf16.msra.mxu0 0
    %118 = vmatprep.subr.bf16.mxu0 0
    %119 = vmatpush1.bf16.msra.mxu0 0
    %120 = vmatprep.subr.bf16.mxu0 0
    %121 = vmatpush1.bf16.msra.mxu0 0
    %122 = vmatprep.subr.bf16.mxu0 0
    %123 = vmatpush1.bf16.msra.mxu0 0
    %124 = vmatprep.subr.bf16.mxu0 0
    %125 = vmatpush1.bf16.msra.mxu0 0
    %126 = vmatprep.subr.bf16.mxu0 0
    %127 = vmatpush1.bf16.msra.mxu0 0
    %128 = vmatprep.subr.bf16.mxu0 0
    %129 = vmatpush1.bf16.msra.mxu0 0
    %130 = vmatprep.subr.bf16.mxu0 0
    %131 = vmatpush1.bf16.msra.mxu0 0
    %132 = vmatprep.subr.bf16.mxu0 0
    %133 = vmatpush1.bf16.msra.mxu0 0
    %134 = vmatprep.mubr.bf16.mxu0 0
    %135 = vmatmul.mubr.bf16.gmra.mrb[0].mxu0 %v100
    %v136 = vpop.f32.mrb[0].mxu0
    %v137 = vadd.f32 %v90, %v136
    %v138 = vpop.f32.mrb[0].mxu0
    %v139 = vpop.f32.mrb[0].mxu0
    %v140 = vpop.f32.mrb[0].mxu0
    %141 = vdwg.mxu0
    %v142 = vmax.f32 %v137, 0.0
    %v143 = vpack.c.bf16 %v142, %v142
    %v144 = vld [vmem:[%s3] sm:$0xf]
    %v145 = vld [vmem:[%s3 + $0x4] sm:$0xf]
    %v146 = vld [vmem:[%s3 + $0x8] sm:$0xf]
    %v147 = vld [vmem:[%s3 + $0xc] sm:$0xf]
    %v148 = vlaneseq
    %v149 = vshrl.u32 %v148, 7
    %v150 = vsub.s32 0, %v149
    %v151 = vrot.slane %v50, %v150
    %v156 = vunpack.c.l.b16 %v144
    %v157 = vunpack.c.l.b16 %v145
    %v158 = vunpack.c.l.b16 %v146
    %v159 = vunpack.c.l.b16 %v147
    %v160 = vpack.c.b16 %v157, %v156
    %v161 = vpack.c.b16 %v159, %v158
    %v165 = vsel %vm57, %v143, 0
    %167 = vmatprep.subr.bf16.mxu0 0
    %168 = vmatpush1.bf16.msra.mxu0 %v160
    %169 = vmatprep.subr.bf16.mxu0 0
    %170 = vmatpush1.bf16.msra.mxu0 %v161
    %171 = vmatprep.subr.bf16.mxu0 0
    %172 = vmatpush1.bf16.msra.mxu0 0
    %173 = vmatprep.subr.bf16.mxu0 0
    %174 = vmatpush1.bf16.msra.mxu0 0
    %175 = vmatprep.subr.bf16.mxu0 0
    %176 = vmatpush1.bf16.msra.mxu0 0
    %177 = vmatprep.subr.bf16.mxu0 0
    %178 = vmatpush1.bf16.msra.mxu0 0
    %179 = vmatprep.subr.bf16.mxu0 0
    %180 = vmatpush1.bf16.msra.mxu0 0
    %181 = vmatprep.subr.bf16.mxu0 0
    %182 = vmatpush1.bf16.msra.mxu0 0
    %183 = vmatprep.subr.bf16.mxu0 0
    %184 = vmatpush1.bf16.msra.mxu0 0
    %185 = vmatprep.subr.bf16.mxu0 0
    %186 = vmatpush1.bf16.msra.mxu0 0
    %187 = vmatprep.subr.bf16.mxu0 0
    %188 = vmatpush1.bf16.msra.mxu0 0
    %189 = vmatprep.subr.bf16.mxu0 0
    %190 = vmatpush1.bf16.msra.mxu0 0
    %191 = vmatprep.subr.bf16.mxu0 0
    %192 = vmatpush1.bf16.msra.mxu0 0
    %193 = vmatprep.subr.bf16.mxu0 0
    %194 = vmatpush1.bf16.msra.mxu0 0
    %195 = vmatprep.subr.bf16.mxu0 0
    %196 = vmatpush1.bf16.msra.mxu0 0
    %197 = vmatprep.subr.bf16.mxu0 0
    %198 = vmatpush1.bf16.msra.mxu0 0
    %199 = vmatprep.mubr.bf16.mxu0 0
    %200 = vmatmul.mubr.bf16.gmra.mrb[0].mxu0 %v165
    %v201 = vpop.f32.mrb[0].mxu0
    %v202 = vadd.f32 %v151, %v201
    %v203 = vpop.f32.mrb[0].mxu0
    %v204 = vpop.f32.mrb[0].mxu0
    %v205 = vpop.f32.mrb[0].mxu0
    %206 = vdwg.mxu0
    %v207 = vmul.f32 %v81, %v202
    %v208 = vpack.c.bf16 %v207, %v207
    %v209 = vld [vmem:[%s4] sm:$0xf]
    %v210 = vld [vmem:[%s4 + $0x4] sm:$0xf]
    %v211 = vld [vmem:[%s4 + $0x8] sm:$0xf]
    %v212 = vld [vmem:[%s4 + $0xc] sm:$0xf]
    %v213 = vlaneseq
    %v214 = vshrl.u32 %v213, 7
    %v215 = vsub.s32 0, %v214
    %v216 = vrot.slane %v53, %v215
    %v221 = vunpack.c.l.b16 %v209
    %v222 = vunpack.c.l.b16 %v210
    %v223 = vunpack.c.l.b16 %v211
    %v224 = vunpack.c.l.b16 %v212
    %v225 = vpack.c.b16 %v222, %v221
    %v226 = vpack.c.b16 %v224, %v223
    %v230 = vsel %vm57, %v208, 0
    %232 = vmatprep.subr.bf16.mxu0 0
    %233 = vmatpush1.bf16.msra.mxu0 %v225
    %234 = vmatprep.subr.bf16.mxu0 0
    %235 = vmatpush1.bf16.msra.mxu0 %v226
    %236 = vmatprep.subr.bf16.mxu0 0
    %237 = vmatpush1.bf16.msra.mxu0 0
    %238 = vmatprep.subr.bf16.mxu0 0
    %239 = vmatpush1.bf16.msra.mxu0 0
    %240 = vmatprep.subr.bf16.mxu0 0
    %241 = vmatpush1.bf16.msra.mxu0 0
    %242 = vmatprep.subr.bf16.mxu0 0
    %243 = vmatpush1.bf16.msra.mxu0 0
    %244 = vmatprep.subr.bf16.mxu0 0
    %245 = vmatpush1.bf16.msra.mxu0 0
    %246 = vmatprep.subr.bf16.mxu0 0
    %247 = vmatpush1.bf16.msra.mxu0 0
    %248 = vmatprep.subr.bf16.mxu0 0
    %249 = vmatpush1.bf16.msra.mxu0 0
    %250 = vmatprep.subr.bf16.mxu0 0
    %251 = vmatpush1.bf16.msra.mxu0 0
    %252 = vmatprep.subr.bf16.mxu0 0
    %253 = vmatpush1.bf16.msra.mxu0 0
    %254 = vmatprep.subr.bf16.mxu0 0
    %255 = vmatpush1.bf16.msra.mxu0 0
    %256 = vmatprep.subr.bf16.mxu0 0
    %257 = vmatpush1.bf16.msra.mxu0 0
    %258 = vmatprep.subr.bf16.mxu0 0
    %259 = vmatpush1.bf16.msra.mxu0 0
    %260 = vmatprep.subr.bf16.mxu0 0
    %261 = vmatpush1.bf16.msra.mxu0 0
    %262 = vmatprep.subr.bf16.mxu0 0
    %263 = vmatpush1.bf16.msra.mxu0 0
    %264 = vmatprep.mubr.bf16.mxu0 0
    %265 = vmatmul.mubr.bf16.gmra.mrb[0].mxu0 %v230
    %v266 = vpop.f32.mrb[0].mxu0
    %v267 = vadd.f32 %v216, %v266
    %v268 = vpop.f32.mrb[0].mxu0
    %v269 = vpop.f32.mrb[0].mxu0
    %v270 = vpop.f32.mrb[0].mxu0
    %271 = vdwg.mxu0
    %vm272 = vcmask 523264
    %v273 = vsel %vm272, %v267, 0.0
    %274 = vadd.xlane.f32.xlu0 %v273
    %v275 = vpop.xlane.xlu0 %274
    %v276 = vrcp.pop 64.0
    %v277 = vmul.f32 %v275, %v276
    %v278 = vsub.f32 %v267, %v277
    %v279 = vmul.f32 %v278, %v278
    %v280 = vsel %vm272, %v279, 0.0
    %281 = vadd.xlane.f32.xlu0 %v280
    %v282 = vpop.xlane.xlu0 %281
    %v283 = vmul.f32 %v282, %v276
    %v284 = vadd.f32 %v283, 1e-05
    %v285 = vrsqrt.pop %v284
    %v286 = vmul.f32 %v278, %v285
    %v287 = vlaneseq
    %v288 = vshrl.u32 %v287, 7
    %v289 = vsub.s32 0, %v288
    %v290 = vrot.slane %v54, %v289
    %v291 = vmul.f32 %v286, %v290
    %v292 = vlaneseq
    %v293 = vshrl.u32 %v292, 7
    %v294 = vsub.s32 0, %v293
    %v295 = vrot.slane %v55, %v294
    %v296 = vadd.f32 %v291, %v295
    %v297 = vmax.f32 %v296, 0.0
    %v298 = vpack.c.bf16 %v297, %v297
    %v299 = vld [vmem:[%s5] sm:$0xf]
    %v300 = vld [vmem:[%s5 + $0x4] sm:$0xf]
    %v301 = vld [vmem:[%s5 + $0x8] sm:$0xf]
    %v302 = vld [vmem:[%s5 + $0xc] sm:$0xf]
    %v303 = vld [vmem:[%s5 + $0x10] sm:$0xf]
    %v304 = vld [vmem:[%s5 + $0x14] sm:$0xf]
    %v305 = vld [vmem:[%s5 + $0x18] sm:$0xf]
    %v306 = vld [vmem:[%s5 + $0x1c] sm:$0xf]
    %v307 = vlaneseq
    %v308 = vshrl.u32 %v307, 7
    %v309 = vsub.s32 0, %v308
    %v310 = vrot.slane %v51, %v309
    %v319 = vunpack.c.l.b16 %v299
    %v320 = vunpack.c.l.b16 %v300
    %v321 = vunpack.c.l.b16 %v301
    %v322 = vunpack.c.l.b16 %v302
    %v323 = vunpack.c.l.b16 %v303
    %v324 = vunpack.c.l.b16 %v304
    %v325 = vunpack.c.l.b16 %v305
    %v326 = vunpack.c.l.b16 %v306
    %v327 = vpack.c.b16 %v320, %v319
    %v328 = vpack.c.b16 %v322, %v321
    %v329 = vpack.c.b16 %v324, %v323
    %v330 = vpack.c.b16 %v326, %v325
    %v336 = vsel %vm272, %v298, 0
    %338 = vmatprep.subr.bf16.mxu0 0
    %339 = vmatpush1.bf16.msra.mxu0 %v327
    %340 = vmatprep.subr.bf16.mxu0 0
    %341 = vmatpush1.bf16.msra.mxu0 %v328
    %342 = vmatprep.subr.bf16.mxu0 0
    %343 = vmatpush1.bf16.msra.mxu0 %v329
    %344 = vmatprep.subr.bf16.mxu0 0
    %345 = vmatpush1.bf16.msra.mxu0 %v330
    %346 = vmatprep.subr.bf16.mxu0 0
    %347 = vmatpush1.bf16.msra.mxu0 0
    %348 = vmatprep.subr.bf16.mxu0 0
    %349 = vmatpush1.bf16.msra.mxu0 0
    %350 = vmatprep.subr.bf16.mxu0 0
    %351 = vmatpush1.bf16.msra.mxu0 0
    %352 = vmatprep.subr.bf16.mxu0 0
    %353 = vmatpush1.bf16.msra.mxu0 0
    %354 = vmatprep.subr.bf16.mxu0 0
    %355 = vmatpush1.bf16.msra.mxu0 0
    %356 = vmatprep.subr.bf16.mxu0 0
    %357 = vmatpush1.bf16.msra.mxu0 0
    %358 = vmatprep.subr.bf16.mxu0 0
    %359 = vmatpush1.bf16.msra.mxu0 0
    %360 = vmatprep.subr.bf16.mxu0 0
    %361 = vmatpush1.bf16.msra.mxu0 0
    %362 = vmatprep.subr.bf16.mxu0 0
    %363 = vmatpush1.bf16.msra.mxu0 0
    %364 = vmatprep.subr.bf16.mxu0 0
    %365 = vmatpush1.bf16.msra.mxu0 0
    %366 = vmatprep.subr.bf16.mxu0 0
    %367 = vmatpush1.bf16.msra.mxu0 0
    %368 = vmatprep.subr.bf16.mxu0 0
    %369 = vmatpush1.bf16.msra.mxu0 0
    %370 = vmatprep.mubr.bf16.mxu0 0
    %371 = vmatmul.mubr.bf16.gmra.mrb[0].mxu0 %v336
    %v372 = vpop.f32.mrb[0].mxu0
    %v373 = vadd.f32 %v310, %v372
    %v374 = vpop.f32.mrb[0].mxu0
    %v375 = vpop.f32.mrb[0].mxu0
    %v376 = vpop.f32.mrb[0].mxu0
    %377 = vdwg.mxu0
    %378 = vst.msk [vmem:[#allocation5] sm:$0xff] %vm57, %v373
    // Predicated region
    $region42: #{tpu_custom_call.1} parent=1 // pred_check
      _
    $region43: #{tpu_custom_call.1} parent=1 // pred_check_branch
      %380 = sbr.rel (0) target = $region45
    $region44: #{tpu_custom_call.1} parent=1 // pred_region
      %s382 = ssub.s32 128, 128
      %383 = vsyncadd [#allocation4], %s382
      %s385 = sshll.u32 [#allocation5], 4
      %s386 = int_to_ptr.vmem [resolvable:$true] %s385
      %388 = dma.vmem_to_hbm [thread:$0]  %s386, 128, %s9, [#allocation4]
    $region45: #{tpu_custom_call.1} parent=1 // pred_fallthru
      _
    // Predicated region
    $region46: #{tpu_custom_call.1} parent=1 // pred_check
      _
    $region47: #{tpu_custom_call.1} parent=1 // pred_check_branch
      %390 = sbr.rel (0) target = $region49
    $region48: #{tpu_custom_call.1} parent=1 // pred_region
      %391 = dma.done [#allocation4], 128
    $region49: #{tpu_custom_call.1} parent=1 // pred_fallthru
      _
    %392 = vsyncpa [#allocation3], 1
    %393 = vsyncpa [#allocation4], 1

</llo_original>
